<compile_context>
chip_gen: v6e
topology: v6e:2x2x1
jax: 0.10.0
libtpu: 0.0.40
codegen_flags: <defaults>
</compile_context>

<pallas_src>
import functools

import jax
import jax.numpy as jnp
from jax import lax
from jax.experimental import pallas as pl
from jax.experimental.pallas import tpu as pltpu


def _layernorm_kernel(x_ref, gb_ref, o_ref, *, eps):
    # x_ref: (blk_bc, F, T) block; F on sublanes, T on lanes.
    x = x_ref[...].astype(jnp.float32)
    gamma = gb_ref[0]                                   # (F, 1)
    beta = gb_ref[1]                                    # (F, 1)
    mean = jnp.mean(x, axis=1, keepdims=True)           # (blk_bc, 1, T) sublane reduce (XLU)
    xc = x - mean
    var = jnp.mean(xc * xc, axis=1, keepdims=True)      # biased variance, like torch
    rstd = lax.rsqrt(var + eps)                         # (blk_bc, 1, T) -> EUP slot
    y = xc * rstd * gamma + beta                        # (F,1) affine broadcasts over T
    o_ref[...] = y.astype(o_ref.dtype)


def _pick_blk_bc(bc, row_bytes, target_block_bytes):
    """Rows per block: ~target_block_bytes per block, but keep >=2 grid steps
    (v7x megacore) whenever there are >=2 rows."""
    blk = max(1, target_block_bytes // max(row_bytes, 1))
    if bc >= 2:
        blk = min(blk, pl.cdiv(bc, 2))
    return min(blk, bc)


def cnn_layernorm_forward(x, gamma, beta, *, eps=1e-5, target_block_bytes=2 << 20):
    """x: (B, C, n_feats, time); gamma/beta: (n_feats,). Matches CNNLayerNorm.forward."""
    B, C, F, T = x.shape
    BC = B * C

    # Free reshapes only (leading dims merge/split): no layout copies.
    x3 = x.reshape(BC, F, T)
    gb = jnp.stack([gamma, beta], axis=0).astype(jnp.float32).reshape(2, F, 1)

    itemsize = jnp.dtype(x.dtype).itemsize
    row_bytes = F * T * itemsize
    blk_bc = _pick_blk_bc(BC, row_bytes, target_block_bytes)
    grid = (pl.cdiv(BC, blk_bc),)                       # partial last block is fine:
                                                        # rows are independent, stores clipped.

    # VMEM budget: double-buffered input + output blocks (+ tiny gb + margin).
    block_bytes = blk_bc * row_bytes
    vmem_needed = 4 * block_bytes + 2 * F * 128 * 4 + (1 << 20)
    cparams = {"dimension_semantics": ("parallel",)}
    if vmem_needed > (16 << 20):                        # only raise past v5e's default
        cparams["vmem_limit_bytes"] = int(min(vmem_needed, 48 << 20))

    out3 = pl.pallas_call(
        functools.partial(_layernorm_kernel, eps=eps),
        out_shape=jax.ShapeDtypeStruct((BC, F, T), x.dtype),
        grid=grid,
        in_specs=[
            pl.BlockSpec((blk_bc, F, T), lambda i: (i, 0, 0)),
            pl.BlockSpec((2, F, 1), lambda i: (0, 0, 0)),   # constant index -> one DMA
        ],
        out_specs=pl.BlockSpec((blk_bc, F, T), lambda i: (i, 0, 0)),
        compiler_params=pltpu.CompilerParams(**cparams),
        cost_estimate=pl.CostEstimate(
            flops=7 * B * C * F * T,
            transcendentals=B * C * T,
            bytes_accessed=2 * B * C * F * T * itemsize,
        ),
    )(x3, gb)

    return out3.reshape(B, C, F, T)


def cnn_layernorm_reference(x, gamma, beta, eps=1e-5):
    """Pure-JAX reference matching the PyTorch forward."""
    xt = jnp.transpose(x, (0, 1, 3, 2))                  # (B, C, time, n_feats)
    mu = jnp.mean(xt, axis=-1, keepdims=True)
    var = jnp.mean((xt - mu) ** 2, axis=-1, keepdims=True)
    y = (xt - mu) / jnp.sqrt(var + eps) * gamma + beta
    return jnp.transpose(y, (0, 1, 3, 2))


if __name__ == "__main__":
    def run_case(B, C, F, T, key, target_block_bytes=2 << 20):
        kx, kg, kb = jax.random.split(key, 3)
        x = jax.random.normal(kx, (B, C, F, T), jnp.float32)
        gamma = 1.0 + 0.1 * jax.random.normal(kg, (F,), jnp.float32)
        beta = 0.1 * jax.random.normal(kb, (F,), jnp.float32)

        out = jax.block_until_ready(
            cnn_layernorm_forward(x, gamma, beta,
                                  target_block_bytes=target_block_bytes))
        ref = cnn_layernorm_reference(x, gamma, beta)

        assert out.shape == x.shape
        max_err = float(jnp.max(jnp.abs(out - ref)))
        assert jnp.allclose(out, ref, rtol=1e-4, atol=1e-4), f"max_err={max_err}"

    k1, k2, k3 = jax.random.split(jax.random.PRNGKey(0), 3)

    # CNNLayerNorm(n_feats=16) on (B=2, C=4, n_feats=16, time=16):
    # BC=8 -> blk_bc=4, grid=(2,) "parallel" (both v7x TCs busy).
    run_case(2, 4, 16, 16, k1)

    # Larger time: BC=16 -> blk_bc=8, grid=(2,); exercises bigger blocks.
    run_case(2, 8, 16, 64, k2)

    # Ragged shape: BC=15 -> blk_bc=8, grid=(2,) with a partial last block
    # (rows are independent; padded rows are clipped on store).
    run_case(3, 5, 20, 7, k3)

    print("KERNEL_OK")
</pallas_src>

<mosaic_0001>
module attributes {stable_mosaic.version = 11 : i64} {
  func.func @_layernorm_kernel(%arg0: i32, %arg1: memref<4x16x16xf32, #tpu.memory_space<vmem>>, %arg2: memref<2x16x1xf32, #tpu.memory_space<vmem>>, %arg3: memref<4x16x16xf32, #tpu.memory_space<vmem>>) attributes {dimension_semantics = [#tpu.dimension_semantics<parallel>], iteration_bounds = array<i64: 2>, scalar_prefetch = 0 : i64, scratch_operands = 0 : i64, tpu.core_type = #tpu.core_type<tc>, window_params = [{transform_indices = @transform_0, window_bounds = array<i64: 4, 16, 16>}, {pipeline_mode = #tpu.pipeline_mode<synchronous>, transform_indices = @transform_1, window_bounds = array<i64: 2, 16, 1>}, {transform_indices = @transform_2, window_bounds = array<i64: 4, 16, 16>}]} {
    %c0 = arith.constant 0 : index
    %c0_0 = arith.constant 0 : index
    %c0_1 = arith.constant 0 : index
    %0 = vector.load %arg1[%c0, %c0_0, %c0_1] : memref<4x16x16xf32, #tpu.memory_space<vmem>>, vector<4x16x16xf32>
    %c0_2 = arith.constant 0 : index
    %c0_3 = arith.constant 0 : index
    %c0_4 = arith.constant 0 : index
    %1 = vector.load %arg2[%c0_2, %c0_3, %c0_4] : memref<2x16x1xf32, #tpu.memory_space<vmem>>, vector<1x16x1xf32>
    %2 = vector.shape_cast %1 : vector<1x16x1xf32> to vector<16x1xf32>
    %c1 = arith.constant 1 : index
    %c0_5 = arith.constant 0 : index
    %c0_6 = arith.constant 0 : index
    %3 = vector.load %arg2[%c1, %c0_5, %c0_6] : memref<2x16x1xf32, #tpu.memory_space<vmem>>, vector<1x16x1xf32>
    %4 = vector.shape_cast %3 : vector<1x16x1xf32> to vector<16x1xf32>
    %cst = arith.constant dense<0.000000e+00> : vector<4x16xf32>
    %5 = vector.multi_reduction <add>, %0, %cst [1] : vector<4x16x16xf32> to vector<4x16xf32>
    %6 = vector.shape_cast %5 : vector<4x16xf32> to vector<4x1x16xf32>
    %cst_7 = arith.constant 1.600000e+01 : f32
    %7 = vector.broadcast %cst_7 : f32 to vector<4x1x16xf32>
    %8 = arith.divf %6, %7 : vector<4x1x16xf32>
    %9 = vector.broadcast %8 : vector<4x1x16xf32> to vector<4x16x16xf32>
    %10 = arith.subf %0, %9 : vector<4x16x16xf32>
    %11 = arith.mulf %10, %10 : vector<4x16x16xf32>
    %cst_8 = arith.constant dense<0.000000e+00> : vector<4x16xf32>
    %12 = vector.multi_reduction <add>, %11, %cst_8 [1] : vector<4x16x16xf32> to vector<4x16xf32>
    %13 = vector.shape_cast %12 : vector<4x16xf32> to vector<4x1x16xf32>
    %cst_9 = arith.constant 1.600000e+01 : f32
    %14 = vector.broadcast %cst_9 : f32 to vector<4x1x16xf32>
    %15 = arith.divf %13, %14 : vector<4x1x16xf32>
    %cst_10 = arith.constant 9.99999974E-6 : f32
    %16 = vector.broadcast %cst_10 : f32 to vector<4x1x16xf32>
    %17 = arith.addf %15, %16 : vector<4x1x16xf32>
    %18 = math.rsqrt %17 : vector<4x1x16xf32>
    %19 = vector.broadcast %18 : vector<4x1x16xf32> to vector<4x16x16xf32>
    %20 = arith.mulf %10, %19 : vector<4x16x16xf32>
    %21 = vector.shape_cast %2 : vector<16x1xf32> to vector<1x16x1xf32>
    %22 = vector.broadcast %21 : vector<1x16x1xf32> to vector<4x16x16xf32>
    %23 = arith.mulf %20, %22 : vector<4x16x16xf32>
    %24 = vector.shape_cast %4 : vector<16x1xf32> to vector<1x16x1xf32>
    %25 = vector.broadcast %24 : vector<1x16x1xf32> to vector<4x16x16xf32>
    %26 = arith.addf %23, %25 : vector<4x16x16xf32>
    %c0_11 = arith.constant 0 : index
    %c0_12 = arith.constant 0 : index
    %c0_13 = arith.constant 0 : index
    %27 = vector.load %arg3[%c0_11, %c0_12, %c0_13] : memref<4x16x16xf32, #tpu.memory_space<vmem>>, vector<4x16x16xf32>
    tpu.vector_store %arg3[%c0_11, %c0_12, %c0_13], %26 {strides = array<i32>} : memref<4x16x16xf32, #tpu.memory_space<vmem>>, vector<4x16x16xf32>,
    return
  }
  func.func @transform_0(%arg0: i32) -> (i32, i32, i32) {
    %c0_i32 = arith.constant 0 : i32
    %c0_i32_0 = arith.constant 0 : i32
    %c0_i32_1 = arith.constant 0 : i32
    return %arg0, %c0_i32, %c0_i32_0 : i32, i32, i32
  }
  func.func @transform_1(%arg0: i32) -> (i32, i32, i32) {
    %c0_i32 = arith.constant 0 : i32
    %c0_i32_0 = arith.constant 0 : i32
    %c0_i32_1 = arith.constant 0 : i32
    %c0_i32_2 = arith.constant 0 : i32
    return %c0_i32, %c0_i32_0, %c0_i32_1 : i32, i32, i32
  }
  func.func @transform_2(%arg0: i32) -> (i32, i32, i32) {
    %c0_i32 = arith.constant 0 : i32
    %c0_i32_0 = arith.constant 0 : i32
    %c0_i32_1 = arith.constant 0 : i32
    return %arg0, %c0_i32, %c0_i32_0 : i32, i32, i32
  }
}

</mosaic_0001>

<llo_original>
// kernel: tpu_custom_call.1
$region0: #{tpu_custom_call.1}
  #allocation0 [shape = 'u32[]', space=smem, size = 0x4, offset = 0x4, fixed_abs, tag = 'smem constant byte address 0x4 - core index']
  #allocation1 [shape = 'u32[144,128]{1,0:T(1,128)}', space=vmem, size = 0x12000, scoped, tag = 'internal scratch']
  %s0 = inlined_call_operand.hbm [shape: f32[8,16,16], index: 0, kind: input, shape index: {}]
  %s1 = inlined_call_operand.vmem [shape: f32[2,16,1], index: 1, kind: input, shape index: {}]
  %s2 = inlined_call_operand.hbm [shape: f32[8,16,16], index: 2, kind: output, shape index: {}]
  %s3 = sld [smem:[#allocation0]]
  $region45: #{tpu_custom_call.1} parent=0
    _
  %s5 = ssub.s32 1, %s3
  %s6 = scalar_select 0, %s5, %s3
  $region1: #{tpu_custom_call.1} parent=0
    #allocation2 [shape = 'u8[65536]{0}', space=vmem, size = 0x10000, scoped, tag = 'input window, operand 0']
    #allocation3 [shape = 's32[2]{0}', space=sflag, size = 0x8, scoped, tag = 'scoped memory for tpu_custom_call.1']
    #allocation4 [shape = 's32[2]{0}', space=sflag, size = 0x8, scoped, tag = 'scoped memory for tpu_custom_call.1']
    #allocation5 [shape = 'u8[65536]{0}', space=vmem, size = 0x10000, scoped, tag = 'output window, operand 0']
    %7 = vsyncpa [#allocation3], 0
    %s8 = scalar_lea.sflag [#allocation3], 1
    %9 = vsyncpa %s8, 0
    %10 = vsyncpa [#allocation4], 0
    %s11 = scalar_lea.sflag [#allocation4], 1
    %12 = vsyncpa %s11, 0
    loop: start=0, step=1, limit=4
    $region2: #{tpu_custom_call.1} parent=1 // loop_pre_header
      _
    $region3: #{tpu_custom_call.1} parent=1 // loop_header
      %s14 = sphi 0, %s18
      %p15 = scmp.ge.s32.totalorder %s14, 4
      %s24 = sphi 0, %s26
      %s27 = sphi 0, %s24
      %s28 = sphi 0, %s27
      %s44 = sphi 0, %s28
      %s48 = sphi 0, %s48
      %s50 = sphi 0, %s48
      %s51 = sphi 0, %s50
      %s65 = sphi 0, %s51
      %s71 = sphi 0, %s73
      %s74 = sphi 0, %s71
      %s75 = sphi 0, %s74
      %s91 = sphi 0, %s75
    $region4: #{tpu_custom_call.1} parent=1 // loop_header_branch
      %17 = sbr.rel (%p15) target = $region8
    $region5: #{tpu_custom_call.1} parent=1 // loop_body
      %s19 = ssub.s32 %s14, 1
      %s20 = ssub.s32 %s14, 2
      %s21 = sadd.s32 %s14, 1
      %s22 = ssub.s32 %s14, %s21
      %p23 = scmp.eq.s32.totalorder %s22, 0
      %s25 = sadd.s32 %s24, 1
      %s26 = scalar_select %p23, %s24, %s25
      %p29 = pneg %p23
      %p30 = scmp.eq.s32.totalorder %s14, 1
      %p31 = por %p29, %p30
      %p32 = scmp.ne.s32.totalorder %s24, %s27
      %p33 = scmp.eq.s32.totalorder %s14, 0
      %p34 = por %p32, %p33
      %p35 = scmp.ne.s32.totalorder %s24, %s27
      %p36 = scmp.eq.s32.totalorder %s19, 1
      %p37 = por %p35, %p36
      %p38 = scmp.ne.s32.totalorder %s27, %s28
      %p39 = scmp.eq.s32.totalorder %s19, 0
      %p40 = por %p38, %p39
      %p41 = scmp.ne.s32.totalorder %s27, %s28
      %p42 = scmp.eq.s32.totalorder %s20, 1
      %p43 = por %p41, %p42
      %p45 = scmp.ne.s32.totalorder %s28, %s44
      %p46 = scmp.eq.s32.totalorder %s20, 0
      %p47 = por %p45, %p46
      %s49 = sadd.s32 %s48, 1
      %p52 = scmp.eq.s32.totalorder %s14, 1
      %p53 = scmp.ne.s32.totalorder %s48, %s50
      %p54 = scmp.eq.s32.totalorder %s14, 0
      %p55 = por %p53, %p54
      %p56 = scmp.ne.s32.totalorder %s48, %s50
      %p57 = scmp.eq.s32.totalorder %s19, 1
      %p58 = por %p56, %p57
      %p59 = scmp.ne.s32.totalorder %s50, %s51
      %p60 = scmp.eq.s32.totalorder %s19, 0
      %p61 = por %p59, %p60
      %p62 = scmp.ne.s32.totalorder %s50, %s51
      %p63 = scmp.eq.s32.totalorder %s20, 1
      %p64 = por %p62, %p63
      %p66 = scmp.ne.s32.totalorder %s51, %s65
      %p67 = scmp.eq.s32.totalorder %s20, 0
      %p68 = por %p66, %p67
      %s69 = ssub.s32 %s14, %s21
      %p70 = scmp.eq.s32.totalorder %s69, 0
      %s72 = sadd.s32 %s71, 1
      %s73 = scalar_select %p70, %s71, %s72
      %p76 = pneg %p70
      %p77 = scmp.eq.s32.totalorder %s14, 1
      %p78 = por %p76, %p77
      %p79 = scmp.ne.s32.totalorder %s71, %s74
      %p80 = scmp.eq.s32.totalorder %s14, 0
      %p81 = por %p79, %p80
      %p82 = scmp.ne.s32.totalorder %s71, %s74
      %p83 = scmp.eq.s32.totalorder %s19, 1
      %p84 = por %p82, %p83
      %p85 = scmp.ne.s32.totalorder %s74, %s75
      %p86 = scmp.eq.s32.totalorder %s19, 0
      %p87 = por %p85, %p86
      %p88 = scmp.ne.s32.totalorder %s74, %s75
      %p89 = scmp.eq.s32.totalorder %s20, 1
      %p90 = por %p88, %p89
      %p92 = scmp.ne.s32.totalorder %s75, %s91
      %p93 = scmp.eq.s32.totalorder %s20, 0
      %p94 = por %p92, %p93
      %p95 = scmp.le.s32.totalorder 1, %s14
      %p96 = scmp.lt.s32.totalorder %s14, 3
      %p97 = pnand %p95, %p96
      %p98 = pneg %p97
      // Predicated region
      $region9: #{tpu_custom_call.1} parent=5 // pred_check
        _
      $region10: #{tpu_custom_call.1} parent=5 // pred_check_branch
        %100 = sbr.rel (%p97) target = $region12
      $region11: #{tpu_custom_call.1} parent=5 // pred_region
        %s101 = ssub.s32 %s14, 1
        // Predicated region
        $region13: #{tpu_custom_call.1} parent=11 // pred_check
          %p102 = pneg %p61
        $region14: #{tpu_custom_call.1} parent=11 // pred_check_branch
          %104 = sbr.rel (%p102) target = $region16
        $region15: #{tpu_custom_call.1} parent=11 // pred_region
          _
        $region16: #{tpu_custom_call.1} parent=11 // pred_fallthru
          _
      $region12: #{tpu_custom_call.1} parent=5 // pred_fallthru
        _
      %p105 = scmp.lt.s32.totalorder %s14, 2
      // Predicated region
      $region17: #{tpu_custom_call.1} parent=5 // pred_check
        %p106 = pneg %p105
      $region18: #{tpu_custom_call.1} parent=5 // pred_check_branch
        %108 = sbr.rel (%p106) target = $region20
      $region19: #{tpu_custom_call.1} parent=5 // pred_region
        // Predicated region
        $region21: #{tpu_custom_call.1} parent=19 // pred_check
          %p109 = pneg %p34
        $region22: #{tpu_custom_call.1} parent=19 // pred_check_branch
          %111 = sbr.rel (%p109) target = $region24
        $region23: #{tpu_custom_call.1} parent=19 // pred_region
          %s112 = sand.u32 %s24, 1
          %s113 = scalar_lea.sflag [#allocation3], %s112
          %s114 = sand.u32 %s24, 1
          %s115 = smul.addr %s114, 64
          %s116 = scalar_lea.vmem [#allocation2], %s115
          %s117 = smul.u32 4, %s14
          %s119 = ssub.s32 1024, 1024
          %120 = vsyncadd %s113, %s119
          %s121 = smul.addr %s117, 2
          %s122 = smul.addr %s121, 128
          %s123 = scalar_lea.hbm %s0, %s122
          %s124 = sshll.u32 %s116, 4
          %s125 = int_to_ptr.vmem [resolvable:$true] %s124
          %130 = dma.hbm_to_vmem [thread:$0]  %s123, 1024, %s125, %s113, 128, 128, 8
        $region24: #{tpu_custom_call.1} parent=19 // pred_fallthru
          _
      $region20: #{tpu_custom_call.1} parent=5 // pred_fallthru
        _
      %p131 = scmp.le.s32.totalorder 1, %s14
      %p132 = scmp.lt.s32.totalorder %s14, 3
      %p133 = pnand %p131, %p132
      %p134 = pneg %p133
      // Predicated region
      $region25: #{tpu_custom_call.1} parent=5 // pred_check
        _
      $region26: #{tpu_custom_call.1} parent=5 // pred_check_branch
        %136 = sbr.rel (%p133) target = $region28
      $region27: #{tpu_custom_call.1} parent=5 // pred_region
        %s137 = ssub.s32 %s14, 1
        %s138 = sand.u32 %s27, 1
        %s139 = scalar_lea.sflag [#allocation3], %s138
        %s140 = sand.u32 %s27, 1
        %s141 = smul.addr %s140, 64
        %s142 = scalar_lea.vmem [#allocation2], %s141
        // Predicated region
        $region29: #{tpu_custom_call.1} parent=27 // pred_check
          %p143 = pneg %p40
        $region30: #{tpu_custom_call.1} parent=27 // pred_check_branch
          %145 = sbr.rel (%p143) target = $region32
        $region31: #{tpu_custom_call.1} parent=27 // pred_region
          %146 = dma.done %s139, 1024
        $region32: #{tpu_custom_call.1} parent=27 // pred_fallthru
          _
        %s147 = sand.u32 %s27, 1
        %s148 = scalar_lea.sflag [#allocation3], %s147
        %s149 = sand.u32 %s27, 1
        %s150 = smul.addr %s149, 64
        %s151 = scalar_lea.vmem [#allocation2], %s150
        %p152 = pneg %p40
        %p153 = pneg %p37
        %p154 = pneg %p61
        %p155 = pneg %p58
        %p156 = pneg %p87
        %p157 = pneg %p84
        %s158 = sand.u32 %s74, 1
        %s159 = scalar_lea.sflag [#allocation4], %s158
        %s160 = sand.u32 %s74, 1
        %s161 = smul.addr %s160, 64
        %s162 = scalar_lea.vmem [#allocation5], %s161
        %s163 = smul.u32 4, %s19
        %s164 = smul.u32 4, %s19
        %v165 = vld [vmem:[%s142] sm:$0xff]
        %v166 = vld [vmem:[%s142 + $0x8] sm:$0xff]
        %v167 = vld [vmem:[%s142 + $0x10] sm:$0xff]
        %v168 = vld [vmem:[%s142 + $0x18] sm:$0xff]
        %v169 = vld [vmem:[%s142 + $0x20] sm:$0xff]
        %v170 = vld [vmem:[%s142 + $0x28] sm:$0xff]
        %v171 = vld [vmem:[%s142 + $0x30] sm:$0xff]
        %v172 = vld [vmem:[%s142 + $0x38] sm:$0xff]
        %v173 = vld [vmem:[%s1] sm:$0xff]
        %v174 = vld [vmem:[%s1 + $0x8] sm:$0xff]
        %s175 = scalar_lea.vmem %s1, 16
        %v176 = vld [vmem:[%s175] sm:$0xff]
        %v177 = vld [vmem:[%s175 + $0x8] sm:$0xff]
        %vm178 = vcmask 130048
        %v179 = vsel %vm178, %v165, 0.0
        %v180 = vsel %vm178, %v166, 0.0
        %v181 = vadd.f32 %v179, %v180
        %v182 = vrot.slane %v181, 4
        %v183 = vadd.f32 %v181, %v182
        %v184 = vrot.slane %v183, 2
        %v185 = vadd.f32 %v183, %v184
        %v186 = vrot.slane %v185, 1
        %v187 = vadd.f32 %v185, %v186
        %v188 = vsel %vm178, %v167, 0.0
        %v189 = vsel %vm178, %v168, 0.0
        %v190 = vadd.f32 %v188, %v189
        %v191 = vrot.slane %v190, 4
        %v192 = vadd.f32 %v190, %v191
        %v193 = vrot.slane %v192, 2
        %v194 = vadd.f32 %v192, %v193
        %v195 = vrot.slane %v194, 1
        %v196 = vadd.f32 %v194, %v195
        %v197 = vsel %vm178, %v169, 0.0
        %v198 = vsel %vm178, %v170, 0.0
        %v199 = vadd.f32 %v197, %v198
        %v200 = vrot.slane %v199, 4
        %v201 = vadd.f32 %v199, %v200
        %v202 = vrot.slane %v201, 2
        %v203 = vadd.f32 %v201, %v202
        %v204 = vrot.slane %v203, 1
        %v205 = vadd.f32 %v203, %v204
        %v206 = vsel %vm178, %v171, 0.0
        %v207 = vsel %vm178, %v172, 0.0
        %v208 = vadd.f32 %v206, %v207
        %v209 = vrot.slane %v208, 4
        %v210 = vadd.f32 %v208, %v209
        %v211 = vrot.slane %v210, 2
        %v212 = vadd.f32 %v210, %v211
        %v213 = vrot.slane %v212, 1
        %v214 = vadd.f32 %v212, %v213
        %v215 = vrcp.pop 16.0
        %v216 = vmul.f32 %v187, %v215
        %v217 = vmul.f32 %v196, %v215
        %v218 = vmul.f32 %v205, %v215
        %v219 = vmul.f32 %v214, %v215
        %v220 = vsub.f32 %v165, %v216
        %v221 = vsub.f32 %v166, %v216
        %v222 = vsub.f32 %v167, %v217
        %v223 = vsub.f32 %v168, %v217
        %v224 = vsub.f32 %v169, %v218
        %v225 = vsub.f32 %v170, %v218
        %v226 = vsub.f32 %v171, %v219
        %v227 = vsub.f32 %v172, %v219
        %v228 = vmul.f32 %v220, %v220
        %v229 = vmul.f32 %v221, %v221
        %v230 = vmul.f32 %v222, %v222
        %v231 = vmul.f32 %v223, %v223
        %v232 = vmul.f32 %v224, %v224
        %v233 = vmul.f32 %v225, %v225
        %v234 = vmul.f32 %v226, %v226
        %v235 = vmul.f32 %v227, %v227
        %v236 = vsel %vm178, %v228, 0.0
        %v237 = vsel %vm178, %v229, 0.0
        %v238 = vadd.f32 %v236, %v237
        %v239 = vrot.slane %v238, 4
        %v240 = vadd.f32 %v238, %v239
        %v241 = vrot.slane %v240, 2
        %v242 = vadd.f32 %v240, %v241
        %v243 = vrot.slane %v242, 1
        %v244 = vadd.f32 %v242, %v243
        %v245 = vsel %vm178, %v230, 0.0
        %v246 = vsel %vm178, %v231, 0.0
        %v247 = vadd.f32 %v245, %v246
        %v248 = vrot.slane %v247, 4
        %v249 = vadd.f32 %v247, %v248
        %v250 = vrot.slane %v249, 2
        %v251 = vadd.f32 %v249, %v250
        %v252 = vrot.slane %v251, 1
        %v253 = vadd.f32 %v251, %v252
        %v254 = vsel %vm178, %v232, 0.0
        %v255 = vsel %vm178, %v233, 0.0
        %v256 = vadd.f32 %v254, %v255
        %v257 = vrot.slane %v256, 4
        %v258 = vadd.f32 %v256, %v257
        %v259 = vrot.slane %v258, 2
        %v260 = vadd.f32 %v258, %v259
        %v261 = vrot.slane %v260, 1
        %v262 = vadd.f32 %v260, %v261
        %v263 = vsel %vm178, %v234, 0.0
        %v264 = vsel %vm178, %v235, 0.0
        %v265 = vadd.f32 %v263, %v264
        %v266 = vrot.slane %v265, 4
        %v267 = vadd.f32 %v265, %v266
        %v268 = vrot.slane %v267, 2
        %v269 = vadd.f32 %v267, %v268
        %v270 = vrot.slane %v269, 1
        %v271 = vadd.f32 %v269, %v270
        %v272 = vmul.f32 %v244, %v215
        %v273 = vmul.f32 %v253, %v215
        %v274 = vmul.f32 %v262, %v215
        %v275 = vmul.f32 %v271, %v215
        %v276 = vadd.f32 %v272, 1e-05
        %v277 = vadd.f32 %v273, 1e-05
        %v278 = vadd.f32 %v274, 1e-05
        %v279 = vadd.f32 %v275, 1e-05
        %v280 = vrsqrt.pop %v276
        %v281 = vrsqrt.pop %v277
        %v282 = vrsqrt.pop %v278
        %v283 = vrsqrt.pop %v279
        %v284 = vmul.f32 %v220, %v280
        %v285 = vmul.f32 %v221, %v280
        %v286 = vmul.f32 %v222, %v281
        %v287 = vmul.f32 %v223, %v281
        %v288 = vmul.f32 %v224, %v282
        %v289 = vmul.f32 %v225, %v282
        %v290 = vmul.f32 %v226, %v283
        %v291 = vmul.f32 %v227, %v283
        %293 = vset.pattern.permute.xlu0 0
        %294 = vperm.xlu0 %293, %v173
        %v295 = vpop.permute.xlu0 %294
        %298 = vset.pattern.permute.xlu0 0
        %299 = vperm.xlu0 %298, %v174
        %v300 = vpop.permute.xlu0 %299
        %v302 = vmul.f32 %v284, %v295
        %v303 = vmul.f32 %v285, %v300
        %v304 = vmul.f32 %v286, %v295
        %v305 = vmul.f32 %v287, %v300
        %v306 = vmul.f32 %v288, %v295
        %v307 = vmul.f32 %v289, %v300
        %v308 = vmul.f32 %v290, %v295
        %v309 = vmul.f32 %v291, %v300
        %311 = vset.pattern.permute.xlu0 0
        %312 = vperm.xlu0 %311, %v176
        %v313 = vpop.permute.xlu0 %312
        %316 = vset.pattern.permute.xlu0 0
        %317 = vperm.xlu0 %316, %v177
        %v318 = vpop.permute.xlu0 %317
        %v320 = vadd.f32 %v302, %v313
        %v321 = vadd.f32 %v303, %v318
        %v322 = vadd.f32 %v304, %v313
        %v323 = vadd.f32 %v305, %v318
        %v324 = vadd.f32 %v306, %v313
        %v325 = vadd.f32 %v307, %v318
        %v326 = vadd.f32 %v308, %v313
        %v327 = vadd.f32 %v309, %v318
        %328 = vst.msk [vmem:[%s162] sm:$0xff] %vm178, %v320
        %329 = vst.msk [vmem:[%s162 + $0x8] sm:$0xff] %vm178, %v321
        %330 = vst.msk [vmem:[%s162 + $0x10] sm:$0xff] %vm178, %v322
        %331 = vst.msk [vmem:[%s162 + $0x18] sm:$0xff] %vm178, %v323
        %332 = vst.msk [vmem:[%s162 + $0x20] sm:$0xff] %vm178, %v324
        %333 = vst.msk [vmem:[%s162 + $0x28] sm:$0xff] %vm178, %v325
        %334 = vst.msk [vmem:[%s162 + $0x30] sm:$0xff] %vm178, %v326
        %335 = vst.msk [vmem:[%s162 + $0x38] sm:$0xff] %vm178, %v327
        %s336 = sand.u32 %s74, 1
        %s337 = scalar_lea.sflag [#allocation4], %s336
        %s338 = sand.u32 %s74, 1
        %s339 = smul.addr %s338, 64
        %s340 = scalar_lea.vmem [#allocation5], %s339
        // Predicated region
        $region33: #{tpu_custom_call.1} parent=27 // pred_check
          %p341 = pneg %p84
        $region34: #{tpu_custom_call.1} parent=27 // pred_check_branch
          %343 = sbr.rel (%p341) target = $region36
        $region35: #{tpu_custom_call.1} parent=27 // pred_region
          %s344 = smul.u32 4, %s19
          %s346 = ssub.s32 1024, 1024
          %347 = vsyncadd %s337, %s346
          %s348 = smul.addr %s344, 2
          %s349 = smul.addr %s348, 128
          %s350 = scalar_lea.hbm %s2, %s349
          %s351 = sshll.u32 %s340, 4
          %s352 = int_to_ptr.vmem [resolvable:$true] %s351
          %357 = dma.vmem_to_hbm [thread:$0]  %s352, 1024, %s350, %s337, 128, 128, 8
        $region36: #{tpu_custom_call.1} parent=27 // pred_fallthru
          _
      $region28: #{tpu_custom_call.1} parent=5 // pred_fallthru
        _
      %p358 = scmp.le.s32.totalorder 2, %s14
      // Predicated region
      $region37: #{tpu_custom_call.1} parent=5 // pred_check
        %p359 = pneg %p358
      $region38: #{tpu_custom_call.1} parent=5 // pred_check_branch
        %361 = sbr.rel (%p359) target = $region40
      $region39: #{tpu_custom_call.1} parent=5 // pred_region
        %s362 = ssub.s32 %s14, 2
        // Predicated region
        $region41: #{tpu_custom_call.1} parent=39 // pred_check
          %p363 = pneg %p90
        $region42: #{tpu_custom_call.1} parent=39 // pred_check_branch
          %365 = sbr.rel (%p363) target = $region44
        $region43: #{tpu_custom_call.1} parent=39 // pred_region
          %s366 = sand.u32 %s75, 1
          %s367 = scalar_lea.sflag [#allocation4], %s366
          %s368 = sand.u32 %s75, 1
          %s369 = smul.addr %s368, 64
          %s370 = scalar_lea.vmem [#allocation5], %s369
          %371 = dma.done %s367, 1024
        $region44: #{tpu_custom_call.1} parent=39 // pred_fallthru
          _
      $region40: #{tpu_custom_call.1} parent=5 // pred_fallthru
        _
    $region6: #{tpu_custom_call.1} parent=1 // loop_footer
      %s18 = sadd.s32 1, %s14
    $region7: #{tpu_custom_call.1} parent=1 // loop_footer_branch
      %13 = sbr.rel target = $region3
    $region8: #{tpu_custom_call.1} parent=1 // loop_exit
      _
    %372 = vsyncpa [#allocation3], 1
    %s373 = scalar_lea.sflag [#allocation3], 1
    %374 = vsyncpa %s373, 1
    %375 = vsyncpa [#allocation4], 1
    %s376 = scalar_lea.sflag [#allocation4], 1
    %377 = vsyncpa %s376, 1

</llo_original>
